<compile_context>
chip_gen: v6e
topology: v6e:2x2x1
jax: 0.10.0
libtpu: 0.0.40
codegen_flags: <defaults>
</compile_context>

<pallas_src>
import functools
import math

import jax
import jax.numpy as jnp
from jax import lax
from jax.experimental import pallas as pl
from jax.experimental.pallas import tpu as pltpu


def _mlp_kernel(n_layers, x_ref, *refs):
    """Fused MLP forward in transposed (features, batch_tile) layout.

    refs = (w0, b0, w1, b1, ..., w_{L-1}, b_{L-1}, o_ref).
      w0:          (out_0, in_0)        f32   (in_0 == 2)
      hidden w_i:  (out_i, in_i)        f32 or bf16 (dtype picked by wrapper)
      last  w:     (in_last, out_last)  f32   (pre-transposed by the wrapper)
      b_i:         (out_i, 1)           f32
    Computes o = W_{L-1} @ tanh(... tanh(W_0 @ x + b_0) ...) + b_{L-1}.
    """
    o_ref = refs[-1]
    x = x_ref[...]                                        # (in_0, TB) f32
    d_in = x.shape[0]

    # ---- layer 0: K = d_in (==2) -> VPU broadcast FMAs, skip the MXU -------
    w0 = refs[0][...]                                     # (out_0, d_in)
    b0 = refs[1][...]                                     # (out_0, 1)
    h = w0[:, 0:1] * x[0:1, :] + b0                       # (out_0, TB)
    for k in range(1, d_in):
        h = h + w0[:, k:k + 1] * x[k:k + 1, :]
    if n_layers > 1:
        h = jnp.tanh(h)                                   # EUP transcendental

    # ---- hidden layers: MXU dot (operand dtype = weight dtype, f32 accum) --
    for i in range(1, n_layers - 1):
        w = refs[2 * i][...]                              # (out_i, in_i), f32/bf16
        b = refs[2 * i + 1][...]                          # (out_i, 1), f32
        z = jnp.dot(w, h.astype(w.dtype),
                    preferred_element_type=jnp.float32)   # f32 accumulation
        h = jnp.tanh(z + b)                               # bias/tanh stay f32

    # ---- last layer (weight pre-transposed to (in_last, out_last)) ---------
    if n_layers > 1:
        wl_t = refs[2 * (n_layers - 1)][...]              # (in_last, d_out) f32
        bl = refs[2 * (n_layers - 1) + 1][...]            # (d_out, 1)
        d_out = wl_t.shape[1]
        if d_out == 1:
            # broadcast multiply (VPU) + cross-sublane reduce (XLU); keeps the
            # MXU free and avoids a 1-sublane result pop.
            h = jnp.sum(wl_t * h, axis=0, keepdims=True) + bl
        else:
            h = lax.dot_general(wl_t, h, (((0,), (0,)), ((), ())),
                                preferred_element_type=jnp.float32) + bl

    o_ref[...] = h                                        # lane-dense store


def _round_up(x, m):
    return ((x + m - 1) // m) * m


def _choose_tiling(batch, block_b):
    """Pick (tile, padded_b, n_tiles): tile % 128 == 0, n_tiles >= 2 and even
    so v7x's two TensorCores get balanced work under ("parallel",)."""
    block_b = max(128, int(block_b))
    n_tiles = max(2, -(-batch // block_b))
    if n_tiles % 2:
        n_tiles += 1
    tile = _round_up(-(-batch // n_tiles), 128)
    return tile, tile * n_tiles, n_tiles


@functools.partial(jax.jit, static_argnames=("block_b", "hidden_dot_bf16"))
def burgers_pinn_forward(x, weights, biases, *, block_b=8192, hidden_dot_bf16=True):
    """Forward pass of Burgers_PINN_1d: x (B, 2) -> (B, neurons[-1]).

    weights[i]: (out_i, in_i) as stored by nn.Linear; biases[i]: (out_i,).
    """
    B, d_in = x.shape
    n_layers = len(weights)
    d_out = weights[-1].shape[0]

    tile, padded_b, n_tiles = _choose_tiling(B, block_b)

    # Transposed + zero-padded input (batch on lanes); fuses under jit.
    xt = jnp.pad(x.T.astype(jnp.float32), ((0, 0), (0, padded_b - B)))

    # Parameter operands (weights exactly as nn.Linear stores them, except the
    # last layer which is pre-transposed for the XLU-reduce path).
    params, param_specs = [], []
    for i, (w, b) in enumerate(zip(weights, biases)):
        wi = w.astype(jnp.float32)
        if n_layers > 1 and i == n_layers - 1:
            wi = wi.T                                     # (in_last, d_out)
        elif hidden_dot_bf16 and 0 < i < n_layers - 1:
            wi = wi.astype(jnp.bfloat16)                  # native-MXU operands
        bi = b.reshape(-1, 1).astype(jnp.float32)
        params += [wi, bi]
        # Full-array blocks, constant index_map -> fetched once, VMEM-resident.
        param_specs += [pl.BlockSpec(wi.shape, lambda i: (0, 0)),
                        pl.BlockSpec(bi.shape, lambda i: (0, 0))]

    in_specs = [pl.BlockSpec((d_in, tile), lambda i: (0, i))] + param_specs

    # VMEM budget: double-buffered I/O blocks + a few live (hidden, tile) f32
    # temporaries + resident params, with 2x headroom; clamp for v7x (64 MiB).
    max_h = max(w.shape[0] for w in weights)
    io_bytes = 4 * tile * 2 * (d_in + d_out)
    act_bytes = 4 * tile * max_h * 4
    wb_bytes = 2 * 4 * sum(int(w.size) + int(b.size) for w, b in zip(weights, biases))
    vmem_limit = int(max(16 << 20, min(32 << 20, 2 * (io_bytes + act_bytes + wb_bytes))))

    out_t = pl.pallas_call(
        functools.partial(_mlp_kernel, n_layers),
        out_shape=jax.ShapeDtypeStruct((d_out, padded_b), jnp.float32),
        grid=(n_tiles,),
        in_specs=in_specs,
        out_specs=pl.BlockSpec((d_out, tile), lambda i: (0, i)),
        compiler_params=pltpu.CompilerParams(
            dimension_semantics=("parallel",),            # split tiles across TCs
            vmem_limit_bytes=vmem_limit),
    )(xt, *params)

    return out_t[:, :B].T                                 # back to (B, d_out), fuses


def reference_forward(x, weights, biases):
    h = x
    for i, (w, b) in enumerate(zip(weights, biases)):
        h = h @ w.T + b
        if i < len(weights) - 1:
            h = jnp.tanh(h)
    return h


def init_params(key, neurons):
    """kaiming_uniform_(nonlinearity='relu') weights, zero biases
    (matches Model.initialize_weights)."""
    weights, biases = [], []
    for i in range(len(neurons) - 1):
        fan_in, fan_out = neurons[i], neurons[i + 1]
        bound = math.sqrt(6.0 / fan_in)
        key, sub = jax.random.split(key)
        weights.append(
            jax.random.uniform(sub, (fan_out, fan_in), jnp.float32, -bound, bound))
        biases.append(jnp.zeros((fan_out,), jnp.float32))
    return key, weights, biases


if __name__ == "__main__":
    # neurons[0] == 2 (x, t) as asserted by the module; small hidden width.
    neurons = [2, 32, 32, 1]
    batch = 256

    key = jax.random.PRNGKey(0)
    key, xkey = jax.random.split(key)
    x = jax.random.uniform(xkey, (batch, neurons[0]), jnp.float32, -1.0, 1.0)

    key, weights, biases = init_params(key, neurons)
    ref = reference_forward(x, weights, biases)

    # Exact f32 path.
    out_f32 = jax.block_until_ready(
        burgers_pinn_forward(x, weights, biases, hidden_dot_bf16=False))
    assert out_f32.shape == (batch, neurons[-1])
    assert jnp.allclose(out_f32, ref, rtol=1e-5, atol=1e-5)

    # Fast path: bf16 operands for the 32x32 hidden matmuls, f32 accumulation.
    out_fast = jax.block_until_ready(burgers_pinn_forward(x, weights, biases))
    assert out_fast.shape == (batch, neurons[-1])
    assert float(jnp.max(jnp.abs(out_fast - ref))) < 2e-2

    # TODO(synk): loss()/test_loss() need u_x, u_xx, u_t via autograd plus
    # boundary/initial sampling; pallas_call has no autodiff rule here, so those
    # training-time drivers are left to a custom_vjp/jax.grad around this
    # forward rather than being faked inside the kernel.
    print("KERNEL_OK")
</pallas_src>

<mosaic_0001>
module attributes {stable_mosaic.version = 11 : i64} {
  func.func @_mlp_kernel(%arg0: i32, %arg1: memref<2x128xf32, #tpu.memory_space<vmem>>, %arg2: memref<32x2xf32, #tpu.memory_space<vmem>>, %arg3: memref<32x1xf32, #tpu.memory_space<vmem>>, %arg4: memref<32x32xf32, #tpu.memory_space<vmem>>, %arg5: memref<32x1xf32, #tpu.memory_space<vmem>>, %arg6: memref<32x1xf32, #tpu.memory_space<vmem>>, %arg7: memref<1x1xf32, #tpu.memory_space<vmem>>, %arg8: memref<1x128xf32, #tpu.memory_space<vmem>>) attributes {dimension_semantics = [#tpu.dimension_semantics<parallel>], iteration_bounds = array<i64: 2>, scalar_prefetch = 0 : i64, scratch_operands = 0 : i64, tpu.core_type = #tpu.core_type<tc>, window_params = [{transform_indices = @transform_0, window_bounds = array<i64: 2, 128>}, {pipeline_mode = #tpu.pipeline_mode<synchronous>, transform_indices = @transform_1, window_bounds = array<i64: 32, 2>}, {pipeline_mode = #tpu.pipeline_mode<synchronous>, transform_indices = @transform_2, window_bounds = array<i64: 32, 1>}, {pipeline_mode = #tpu.pipeline_mode<synchronous>, transform_indices = @transform_3, window_bounds = array<i64: 32, 32>}, {pipeline_mode = #tpu.pipeline_mode<synchronous>, transform_indices = @transform_4, window_bounds = array<i64: 32, 1>}, {pipeline_mode = #tpu.pipeline_mode<synchronous>, transform_indices = @transform_5, window_bounds = array<i64: 32, 1>}, {pipeline_mode = #tpu.pipeline_mode<synchronous>, transform_indices = @transform_6, window_bounds = array<i64: 1, 1>}, {transform_indices = @transform_7, window_bounds = array<i64: 1, 128>}]} {
    %c0 = arith.constant 0 : index
    %c0_0 = arith.constant 0 : index
    %0 = vector.load %arg1[%c0, %c0_0] : memref<2x128xf32, #tpu.memory_space<vmem>>, vector<2x128xf32>
    %c0_1 = arith.constant 0 : index
    %c0_2 = arith.constant 0 : index
    %1 = vector.load %arg2[%c0_1, %c0_2] : memref<32x2xf32, #tpu.memory_space<vmem>>, vector<32x2xf32>
    %c0_3 = arith.constant 0 : index
    %c0_4 = arith.constant 0 : index
    %2 = vector.load %arg3[%c0_3, %c0_4] : memref<32x1xf32, #tpu.memory_space<vmem>>, vector<32x1xf32>
    %3 = vector.extract_strided_slice %1 {offsets = [0, 0], sizes = [32, 1], strides = [1, 1]} : vector<32x2xf32> to vector<32x1xf32>
    %4 = vector.extract_strided_slice %0 {offsets = [0, 0], sizes = [1, 128], strides = [1, 1]} : vector<2x128xf32> to vector<1x128xf32>
    %5 = vector.broadcast %3 : vector<32x1xf32> to vector<32x128xf32>
    %6 = vector.broadcast %4 : vector<1x128xf32> to vector<32x128xf32>
    %7 = arith.mulf %5, %6 : vector<32x128xf32>
    %8 = vector.broadcast %2 : vector<32x1xf32> to vector<32x128xf32>
    %9 = arith.addf %7, %8 : vector<32x128xf32>
    %10 = vector.extract_strided_slice %1 {offsets = [0, 1], sizes = [32, 1], strides = [1, 1]} : vector<32x2xf32> to vector<32x1xf32>
    %11 = vector.extract_strided_slice %0 {offsets = [1, 0], sizes = [1, 128], strides = [1, 1]} : vector<2x128xf32> to vector<1x128xf32>
    %12 = vector.broadcast %10 : vector<32x1xf32> to vector<32x128xf32>
    %13 = vector.broadcast %11 : vector<1x128xf32> to vector<32x128xf32>
    %14 = arith.mulf %12, %13 : vector<32x128xf32>
    %15 = arith.addf %9, %14 : vector<32x128xf32>
    %16 = math.tanh %15 : vector<32x128xf32>
    %c0_5 = arith.constant 0 : index
    %c0_6 = arith.constant 0 : index
    %17 = vector.load %arg4[%c0_5, %c0_6] : memref<32x32xf32, #tpu.memory_space<vmem>>, vector<32x32xf32>
    %c0_7 = arith.constant 0 : index
    %c0_8 = arith.constant 0 : index
    %18 = vector.load %arg5[%c0_7, %c0_8] : memref<32x1xf32, #tpu.memory_space<vmem>>, vector<32x1xf32>
    %cst = arith.constant dense<0.000000e+00> : vector<32x128xf32>
    %19 = tpu.matmul %17, %16, %cst {dimension_numbers = #tpu.dot_dimension_numbers<[1], [0], [0], [1], [0, 0, 1, 1], [], []>} : vector<32x32xf32>, vector<32x128xf32>, vector<32x128xf32> -> vector<32x128xf32>
    %20 = vector.broadcast %18 : vector<32x1xf32> to vector<32x128xf32>
    %21 = arith.addf %19, %20 : vector<32x128xf32>
    %22 = math.tanh %21 : vector<32x128xf32>
    %c0_9 = arith.constant 0 : index
    %c0_10 = arith.constant 0 : index
    %23 = vector.load %arg6[%c0_9, %c0_10] : memref<32x1xf32, #tpu.memory_space<vmem>>, vector<32x1xf32>
    %c0_11 = arith.constant 0 : index
    %c0_12 = arith.constant 0 : index
    %24 = vector.load %arg7[%c0_11, %c0_12] : memref<1x1xf32, #tpu.memory_space<vmem>>, vector<1x1xf32>
    %25 = vector.broadcast %23 : vector<32x1xf32> to vector<32x128xf32>
    %26 = arith.mulf %25, %22 : vector<32x128xf32>
    %cst_13 = arith.constant dense<0.000000e+00> : vector<128xf32>
    %27 = vector.multi_reduction <add>, %26, %cst_13 [0] : vector<32x128xf32> to vector<128xf32>
    %28 = vector.shape_cast %27 : vector<128xf32> to vector<1x128xf32>
    %29 = vector.broadcast %24 : vector<1x1xf32> to vector<1x128xf32>
    %30 = arith.addf %28, %29 : vector<1x128xf32>
    %c0_14 = arith.constant 0 : index
    %c0_15 = arith.constant 0 : index
    %31 = vector.load %arg8[%c0_14, %c0_15] : memref<1x128xf32, #tpu.memory_space<vmem>>, vector<1x128xf32>
    tpu.vector_store %arg8[%c0_14, %c0_15], %30 {strides = array<i32>} : memref<1x128xf32, #tpu.memory_space<vmem>>, vector<1x128xf32>,
    return
  }
  func.func @transform_0(%arg0: i32) -> (i32, i32) {
    %c0_i32 = arith.constant 0 : i32
    %c0_i32_0 = arith.constant 0 : i32
    return %c0_i32, %arg0 : i32, i32
  }
  func.func @transform_1(%arg0: i32) -> (i32, i32) {
    %c0_i32 = arith.constant 0 : i32
    %c0_i32_0 = arith.constant 0 : i32
    %c0_i32_1 = arith.constant 0 : i32
    return %c0_i32, %c0_i32_0 : i32, i32
  }
  func.func @transform_2(%arg0: i32) -> (i32, i32) {
    %c0_i32 = arith.constant 0 : i32
    %c0_i32_0 = arith.constant 0 : i32
    %c0_i32_1 = arith.constant 0 : i32
    return %c0_i32, %c0_i32_0 : i32, i32
  }
  func.func @transform_3(%arg0: i32) -> (i32, i32) {
    %c0_i32 = arith.constant 0 : i32
    %c0_i32_0 = arith.constant 0 : i32
    %c0_i32_1 = arith.constant 0 : i32
    return %c0_i32, %c0_i32_0 : i32, i32
  }
  func.func @transform_4(%arg0: i32) -> (i32, i32) {
    %c0_i32 = arith.constant 0 : i32
    %c0_i32_0 = arith.constant 0 : i32
    %c0_i32_1 = arith.constant 0 : i32
    return %c0_i32, %c0_i32_0 : i32, i32
  }
  func.func @transform_5(%arg0: i32) -> (i32, i32) {
    %c0_i32 = arith.constant 0 : i32
    %c0_i32_0 = arith.constant 0 : i32
    %c0_i32_1 = arith.constant 0 : i32
    return %c0_i32, %c0_i32_0 : i32, i32
  }
  func.func @transform_6(%arg0: i32) -> (i32, i32) {
    %c0_i32 = arith.constant 0 : i32
    %c0_i32_0 = arith.constant 0 : i32
    %c0_i32_1 = arith.constant 0 : i32
    return %c0_i32, %c0_i32_0 : i32, i32
  }
  func.func @transform_7(%arg0: i32) -> (i32, i32) {
    %c0_i32 = arith.constant 0 : i32
    %c0_i32_0 = arith.constant 0 : i32
    return %c0_i32, %arg0 : i32, i32
  }
}

</mosaic_0001>

<llo_original>
// kernel: burgers_pinn_forward.1
$region0: #{burgers_pinn_forward.1}
  #allocation0 [shape = 'u32[]', space=smem, size = 0x4, offset = 0x4, fixed_abs, tag = 'smem constant byte address 0x4 - core index']
  #allocation1 [shape = 'u32[144,128]{1,0:T(1,128)}', space=vmem, size = 0x12000, scoped, tag = 'internal scratch']
  #allocation2 [shape = 'f32[1,1]{1,0:T(1,128)S(1)}', space=vmem, size = 0x200, scoped, tag = 'scoped memory for burgers_pinn_forward.1']
  %s0 = inlined_call_operand.vmem [shape: f32[2,256], index: 0, kind: input, shape index: {}]
  %s1 = inlined_call_operand.vmem [shape: f32[32,2], index: 1, kind: input, shape index: {}]
  %s2 = inlined_call_operand.vmem [shape: f32[32,1], index: 2, kind: input, shape index: {}]
  %s3 = inlined_call_operand.vmem [shape: f32[32,32], index: 3, kind: input, shape index: {}]
  %s4 = inlined_call_operand.vmem [shape: f32[32,1], index: 4, kind: input, shape index: {}]
  %s5 = inlined_call_operand.vmem [shape: f32[32,1], index: 5, kind: input, shape index: {}]
  %s6 = inlined_call_operand.<no memory space> [shape: f32[1,1], index: 6, kind: input, shape index: {}]
  %s7 = inlined_call_operand.hbm [shape: f32[1,256], index: 7, kind: output, shape index: {}]
  %s8 = sld [smem:[#allocation0]]
  $region61: #{burgers_pinn_forward.1} parent=0
    _
  %s10 = ssub.s32 1, %s8
  %s11 = scalar_select 0, %s10, %s8
  %v12 = vstv %s6
  %13 = vst [vmem:[#allocation2] sm:$0x1] %v12
  $region1: #{burgers_pinn_forward.1} parent=0
    #allocation3 [shape = 'u8[1024]{0}', space=vmem, size = 0x400, scoped, tag = 'output window, operand 0']
    #allocation4 [shape = 's32[2]{0}', space=sflag, size = 0x8, scoped, tag = 'scoped memory for burgers_pinn_forward.1']
    %14 = vsyncpa [#allocation4], 0
    %s15 = scalar_lea.sflag [#allocation4], 1
    %16 = vsyncpa %s15, 0
    loop: start=0, step=1, limit=4
    $region2: #{burgers_pinn_forward.1} parent=1 // loop_pre_header
      _
    $region3: #{burgers_pinn_forward.1} parent=1 // loop_header
      %s18 = sphi 0, %s22
      %p19 = scmp.ge.s32.totalorder %s18, 4
      %s28 = sphi 0, %s30
      %s31 = sphi 0, %s28
      %s32 = sphi 0, %s31
      %s48 = sphi 0, %s32
      %s52 = sphi 0, %s52
      %s54 = sphi 0, %s52
      %s55 = sphi 0, %s54
      %s69 = sphi 0, %s55
      %s73 = sphi 0, %s73
      %s75 = sphi 0, %s73
      %s76 = sphi 0, %s75
      %s90 = sphi 0, %s76
      %s94 = sphi 0, %s94
      %s96 = sphi 0, %s94
      %s97 = sphi 0, %s96
      %s111 = sphi 0, %s97
      %s115 = sphi 0, %s115
      %s117 = sphi 0, %s115
      %s118 = sphi 0, %s117
      %s132 = sphi 0, %s118
      %s136 = sphi 0, %s136
      %s138 = sphi 0, %s136
      %s139 = sphi 0, %s138
      %s153 = sphi 0, %s139
      %s157 = sphi 0, %s157
      %s159 = sphi 0, %s157
      %s160 = sphi 0, %s159
      %s174 = sphi 0, %s160
      %s180 = sphi 0, %s182
      %s183 = sphi 0, %s180
      %s184 = sphi 0, %s183
      %s200 = sphi 0, %s184
    $region4: #{burgers_pinn_forward.1} parent=1 // loop_header_branch
      %21 = sbr.rel (%p19) target = $region8
    $region5: #{burgers_pinn_forward.1} parent=1 // loop_body
      %s23 = ssub.s32 %s18, 1
      %s24 = ssub.s32 %s18, 2
      %s25 = sadd.s32 %s18, 1
      %s26 = ssub.s32 %s18, %s25
      %p27 = scmp.eq.s32.totalorder %s26, 0
      %s29 = sadd.s32 %s28, 1
      %s30 = scalar_select %p27, %s28, %s29
      %p33 = pneg %p27
      %p34 = scmp.eq.s32.totalorder %s18, 1
      %p35 = por %p33, %p34
      %p36 = scmp.ne.s32.totalorder %s28, %s31
      %p37 = scmp.eq.s32.totalorder %s18, 0
      %p38 = por %p36, %p37
      %p39 = scmp.ne.s32.totalorder %s28, %s31
      %p40 = scmp.eq.s32.totalorder %s23, 1
      %p41 = por %p39, %p40
      %p42 = scmp.ne.s32.totalorder %s31, %s32
      %p43 = scmp.eq.s32.totalorder %s23, 0
      %p44 = por %p42, %p43
      %p45 = scmp.ne.s32.totalorder %s31, %s32
      %p46 = scmp.eq.s32.totalorder %s24, 1
      %p47 = por %p45, %p46
      %p49 = scmp.ne.s32.totalorder %s32, %s48
      %p50 = scmp.eq.s32.totalorder %s24, 0
      %p51 = por %p49, %p50
      %s53 = sadd.s32 %s52, 1
      %p56 = scmp.eq.s32.totalorder %s18, 1
      %p57 = scmp.ne.s32.totalorder %s52, %s54
      %p58 = scmp.eq.s32.totalorder %s18, 0
      %p59 = por %p57, %p58
      %p60 = scmp.ne.s32.totalorder %s52, %s54
      %p61 = scmp.eq.s32.totalorder %s23, 1
      %p62 = por %p60, %p61
      %p63 = scmp.ne.s32.totalorder %s54, %s55
      %p64 = scmp.eq.s32.totalorder %s23, 0
      %p65 = por %p63, %p64
      %p66 = scmp.ne.s32.totalorder %s54, %s55
      %p67 = scmp.eq.s32.totalorder %s24, 1
      %p68 = por %p66, %p67
      %p70 = scmp.ne.s32.totalorder %s55, %s69
      %p71 = scmp.eq.s32.totalorder %s24, 0
      %p72 = por %p70, %p71
      %s74 = sadd.s32 %s73, 1
      %p77 = scmp.eq.s32.totalorder %s18, 1
      %p78 = scmp.ne.s32.totalorder %s73, %s75
      %p79 = scmp.eq.s32.totalorder %s18, 0
      %p80 = por %p78, %p79
      %p81 = scmp.ne.s32.totalorder %s73, %s75
      %p82 = scmp.eq.s32.totalorder %s23, 1
      %p83 = por %p81, %p82
      %p84 = scmp.ne.s32.totalorder %s75, %s76
      %p85 = scmp.eq.s32.totalorder %s23, 0
      %p86 = por %p84, %p85
      %p87 = scmp.ne.s32.totalorder %s75, %s76
      %p88 = scmp.eq.s32.totalorder %s24, 1
      %p89 = por %p87, %p88
      %p91 = scmp.ne.s32.totalorder %s76, %s90
      %p92 = scmp.eq.s32.totalorder %s24, 0
      %p93 = por %p91, %p92
      %s95 = sadd.s32 %s94, 1
      %p98 = scmp.eq.s32.totalorder %s18, 1
      %p99 = scmp.ne.s32.totalorder %s94, %s96
      %p100 = scmp.eq.s32.totalorder %s18, 0
      %p101 = por %p99, %p100
      %p102 = scmp.ne.s32.totalorder %s94, %s96
      %p103 = scmp.eq.s32.totalorder %s23, 1
      %p104 = por %p102, %p103
      %p105 = scmp.ne.s32.totalorder %s96, %s97
      %p106 = scmp.eq.s32.totalorder %s23, 0
      %p107 = por %p105, %p106
      %p108 = scmp.ne.s32.totalorder %s96, %s97
      %p109 = scmp.eq.s32.totalorder %s24, 1
      %p110 = por %p108, %p109
      %p112 = scmp.ne.s32.totalorder %s97, %s111
      %p113 = scmp.eq.s32.totalorder %s24, 0
      %p114 = por %p112, %p113
      %s116 = sadd.s32 %s115, 1
      %p119 = scmp.eq.s32.totalorder %s18, 1
      %p120 = scmp.ne.s32.totalorder %s115, %s117
      %p121 = scmp.eq.s32.totalorder %s18, 0
      %p122 = por %p120, %p121
      %p123 = scmp.ne.s32.totalorder %s115, %s117
      %p124 = scmp.eq.s32.totalorder %s23, 1
      %p125 = por %p123, %p124
      %p126 = scmp.ne.s32.totalorder %s117, %s118
      %p127 = scmp.eq.s32.totalorder %s23, 0
      %p128 = por %p126, %p127
      %p129 = scmp.ne.s32.totalorder %s117, %s118
      %p130 = scmp.eq.s32.totalorder %s24, 1
      %p131 = por %p129, %p130
      %p133 = scmp.ne.s32.totalorder %s118, %s132
      %p134 = scmp.eq.s32.totalorder %s24, 0
      %p135 = por %p133, %p134
      %s137 = sadd.s32 %s136, 1
      %p140 = scmp.eq.s32.totalorder %s18, 1
      %p141 = scmp.ne.s32.totalorder %s136, %s138
      %p142 = scmp.eq.s32.totalorder %s18, 0
      %p143 = por %p141, %p142
      %p144 = scmp.ne.s32.totalorder %s136, %s138
      %p145 = scmp.eq.s32.totalorder %s23, 1
      %p146 = por %p144, %p145
      %p147 = scmp.ne.s32.totalorder %s138, %s139
      %p148 = scmp.eq.s32.totalorder %s23, 0
      %p149 = por %p147, %p148
      %p150 = scmp.ne.s32.totalorder %s138, %s139
      %p151 = scmp.eq.s32.totalorder %s24, 1
      %p152 = por %p150, %p151
      %p154 = scmp.ne.s32.totalorder %s139, %s153
      %p155 = scmp.eq.s32.totalorder %s24, 0
      %p156 = por %p154, %p155
      %s158 = sadd.s32 %s157, 1
      %p161 = scmp.eq.s32.totalorder %s18, 1
      %p162 = scmp.ne.s32.totalorder %s157, %s159
      %p163 = scmp.eq.s32.totalorder %s18, 0
      %p164 = por %p162, %p163
      %p165 = scmp.ne.s32.totalorder %s157, %s159
      %p166 = scmp.eq.s32.totalorder %s23, 1
      %p167 = por %p165, %p166
      %p168 = scmp.ne.s32.totalorder %s159, %s160
      %p169 = scmp.eq.s32.totalorder %s23, 0
      %p170 = por %p168, %p169
      %p171 = scmp.ne.s32.totalorder %s159, %s160
      %p172 = scmp.eq.s32.totalorder %s24, 1
      %p173 = por %p171, %p172
      %p175 = scmp.ne.s32.totalorder %s160, %s174
      %p176 = scmp.eq.s32.totalorder %s24, 0
      %p177 = por %p175, %p176
      %s178 = ssub.s32 %s18, %s25
      %p179 = scmp.eq.s32.totalorder %s178, 0
      %s181 = sadd.s32 %s180, 1
      %s182 = scalar_select %p179, %s180, %s181
      %p185 = pneg %p179
      %p186 = scmp.eq.s32.totalorder %s18, 1
      %p187 = por %p185, %p186
      %p188 = scmp.ne.s32.totalorder %s180, %s183
      %p189 = scmp.eq.s32.totalorder %s18, 0
      %p190 = por %p188, %p189
      %p191 = scmp.ne.s32.totalorder %s180, %s183
      %p192 = scmp.eq.s32.totalorder %s23, 1
      %p193 = por %p191, %p192
      %p194 = scmp.ne.s32.totalorder %s183, %s184
      %p195 = scmp.eq.s32.totalorder %s23, 0
      %p196 = por %p194, %p195
      %p197 = scmp.ne.s32.totalorder %s183, %s184
      %p198 = scmp.eq.s32.totalorder %s24, 1
      %p199 = por %p197, %p198
      %p201 = scmp.ne.s32.totalorder %s184, %s200
      %p202 = scmp.eq.s32.totalorder %s24, 0
      %p203 = por %p201, %p202
      %p204 = scmp.le.s32.totalorder 1, %s18
      %p205 = scmp.lt.s32.totalorder %s18, 3
      %p206 = pnand %p204, %p205
      %p207 = pneg %p206
      // Predicated region
      $region9: #{burgers_pinn_forward.1} parent=5 // pred_check
        _
      $region10: #{burgers_pinn_forward.1} parent=5 // pred_check_branch
        %209 = sbr.rel (%p206) target = $region12
      $region11: #{burgers_pinn_forward.1} parent=5 // pred_region
        %s210 = ssub.s32 %s18, 1
        // Predicated region
        $region13: #{burgers_pinn_forward.1} parent=11 // pred_check
          %p211 = pneg %p65
        $region14: #{burgers_pinn_forward.1} parent=11 // pred_check_branch
          %213 = sbr.rel (%p211) target = $region16
        $region15: #{burgers_pinn_forward.1} parent=11 // pred_region
          _
        $region16: #{burgers_pinn_forward.1} parent=11 // pred_fallthru
          _
        // Predicated region
        $region17: #{burgers_pinn_forward.1} parent=11 // pred_check
          %p214 = pneg %p86
        $region18: #{burgers_pinn_forward.1} parent=11 // pred_check_branch
          %216 = sbr.rel (%p214) target = $region20
        $region19: #{burgers_pinn_forward.1} parent=11 // pred_region
          _
        $region20: #{burgers_pinn_forward.1} parent=11 // pred_fallthru
          _
        // Predicated region
        $region21: #{burgers_pinn_forward.1} parent=11 // pred_check
          %p217 = pneg %p107
        $region22: #{burgers_pinn_forward.1} parent=11 // pred_check_branch
          %219 = sbr.rel (%p217) target = $region24
        $region23: #{burgers_pinn_forward.1} parent=11 // pred_region
          _
        $region24: #{burgers_pinn_forward.1} parent=11 // pred_fallthru
          _
        // Predicated region
        $region25: #{burgers_pinn_forward.1} parent=11 // pred_check
          %p220 = pneg %p128
        $region26: #{burgers_pinn_forward.1} parent=11 // pred_check_branch
          %222 = sbr.rel (%p220) target = $region28
        $region27: #{burgers_pinn_forward.1} parent=11 // pred_region
          _
        $region28: #{burgers_pinn_forward.1} parent=11 // pred_fallthru
          _
        // Predicated region
        $region29: #{burgers_pinn_forward.1} parent=11 // pred_check
          %p223 = pneg %p149
        $region30: #{burgers_pinn_forward.1} parent=11 // pred_check_branch
          %225 = sbr.rel (%p223) target = $region32
        $region31: #{burgers_pinn_forward.1} parent=11 // pred_region
          _
        $region32: #{burgers_pinn_forward.1} parent=11 // pred_fallthru
          _
        // Predicated region
        $region33: #{burgers_pinn_forward.1} parent=11 // pred_check
          %p226 = pneg %p170
        $region34: #{burgers_pinn_forward.1} parent=11 // pred_check_branch
          %228 = sbr.rel (%p226) target = $region36
        $region35: #{burgers_pinn_forward.1} parent=11 // pred_region
          _
        $region36: #{burgers_pinn_forward.1} parent=11 // pred_fallthru
          _
      $region12: #{burgers_pinn_forward.1} parent=5 // pred_fallthru
        _
      %p229 = scmp.lt.s32.totalorder %s18, 2
      // Predicated region
      $region37: #{burgers_pinn_forward.1} parent=5 // pred_check
        %p230 = pneg %p229
      $region38: #{burgers_pinn_forward.1} parent=5 // pred_check_branch
        %232 = sbr.rel (%p230) target = $region40
      $region39: #{burgers_pinn_forward.1} parent=5 // pred_region
        // Predicated region
        $region41: #{burgers_pinn_forward.1} parent=39 // pred_check
          %p233 = pneg %p38
        $region42: #{burgers_pinn_forward.1} parent=39 // pred_check_branch
          %235 = sbr.rel (%p233) target = $region44
        $region43: #{burgers_pinn_forward.1} parent=39 // pred_region
          %p236 = scmp.lt.s32.totalorder %s18, 1
          %s237 = scalar_select %p236, %s18, 1
          %s238 = smul.addr %s237, 2
          %s239 = scalar_lea.vmem %s0, %s238
        $region44: #{burgers_pinn_forward.1} parent=39 // pred_fallthru
          _
      $region40: #{burgers_pinn_forward.1} parent=5 // pred_fallthru
        _
      %p240 = scmp.le.s32.totalorder 1, %s18
      %p241 = scmp.lt.s32.totalorder %s18, 3
      %p242 = pnand %p240, %p241
      %p243 = pneg %p242
      // Predicated region
      $region45: #{burgers_pinn_forward.1} parent=5 // pred_check
        _
      $region46: #{burgers_pinn_forward.1} parent=5 // pred_check_branch
        %245 = sbr.rel (%p242) target = $region48
      $region47: #{burgers_pinn_forward.1} parent=5 // pred_region
        %s246 = ssub.s32 %s18, 1
        %p247 = scmp.lt.s32.totalorder %s23, 1
        %s248 = scalar_select %p247, %s23, 1
        %s249 = smul.addr %s248, 2
        %s250 = scalar_lea.vmem %s0, %s249
        %p251 = pneg %p44
        %p252 = pneg %p41
        %p253 = pneg %p65
        %p254 = pneg %p62
        %p255 = pneg %p86
        %p256 = pneg %p83
        %p257 = pneg %p107
        %p258 = pneg %p104
        %p259 = pneg %p128
        %p260 = pneg %p125
        %p261 = pneg %p149
        %p262 = pneg %p146
        %p263 = pneg %p170
        %p264 = pneg %p167
        %p265 = pneg %p196
        %p266 = pneg %p193
        %s267 = sand.u32 %s183, 1
        %s268 = scalar_lea.sflag [#allocation4], %s267
        %s269 = sand.u32 %s183, 1
        %s270 = scalar_lea.vmem [#allocation3], %s269
        %p271 = scmp.lt.s32.totalorder %s23, 1
        %s272 = scalar_select %p271, %s23, 1
        %s273 = smul.addr %s272, 2
        %s274 = scalar_lea.vmem %s0, %s273
        %v275 = vld [vmem:[%s274] sm:$0x3]
        %v276 = vld [vmem:[%s1] sm:$0xff]
        %v277 = vld [vmem:[%s1 + $0x8] sm:$0xff]
        %v278 = vld [vmem:[%s1 + $0x10] sm:$0xff]
        %v279 = vld [vmem:[%s1 + $0x18] sm:$0xff]
        %v280 = vld [vmem:[%s2] sm:$0xff]
        %v281 = vld [vmem:[%s2 + $0x8] sm:$0xff]
        %v282 = vld [vmem:[%s2 + $0x10] sm:$0xff]
        %v283 = vld [vmem:[%s2 + $0x18] sm:$0xff]
        %285 = vset.pattern.permute.xlu0 0
        %286 = vperm.xlu0 %285, %v276
        %v287 = vpop.permute.xlu0 %286
        %290 = vset.pattern.permute.xlu0 0
        %291 = vperm.xlu0 %290, %v277
        %v292 = vpop.permute.xlu0 %291
        %295 = vset.pattern.permute.xlu0 0
        %296 = vperm.xlu0 %295, %v278
        %v297 = vpop.permute.xlu0 %296
        %300 = vset.pattern.permute.xlu0 0
        %301 = vperm.xlu0 %300, %v279
        %v302 = vpop.permute.xlu0 %301
        %v304 = vlaneseq
        %v305 = vshrl.u32 %v304, 7
        %v306 = vsub.s32 0, %v305
        %v307 = vrot.slane %v275, %v306
        %v308 = vmul.f32 %v287, %v307
        %v309 = vmul.f32 %v292, %v307
        %v310 = vmul.f32 %v297, %v307
        %v311 = vmul.f32 %v302, %v307
        %313 = vset.pattern.permute.xlu0 0
        %314 = vperm.xlu0 %313, %v280
        %v315 = vpop.permute.xlu0 %314
        %318 = vset.pattern.permute.xlu0 0
        %319 = vperm.xlu0 %318, %v281
        %v320 = vpop.permute.xlu0 %319
        %323 = vset.pattern.permute.xlu0 0
        %324 = vperm.xlu0 %323, %v282
        %v325 = vpop.permute.xlu0 %324
        %328 = vset.pattern.permute.xlu0 0
        %329 = vperm.xlu0 %328, %v283
        %v330 = vpop.permute.xlu0 %329
        %v332 = vadd.f32 %v308, %v315
        %v333 = vadd.f32 %v309, %v320
        %v334 = vadd.f32 %v310, %v325
        %v335 = vadd.f32 %v311, %v330
        %336 = vset.pattern.permute.xlu0 1
        %337 = vperm.xlu0 %336, %v276
        %v338 = vpop.permute.xlu0 %337
        %340 = vset.pattern.permute.xlu0 1
        %341 = vperm.xlu0 %340, %v277
        %v342 = vpop.permute.xlu0 %341
        %344 = vset.pattern.permute.xlu0 1
        %345 = vperm.xlu0 %344, %v278
        %v346 = vpop.permute.xlu0 %345
        %348 = vset.pattern.permute.xlu0 1
        %349 = vperm.xlu0 %348, %v279
        %v350 = vpop.permute.xlu0 %349
        %v352 = vlaneseq
        %v353 = vshrl.u32 %v352, 7
        %v354 = vsub.s32 1, %v353
        %v355 = vrot.slane %v275, %v354
        %v356 = vmul.f32 %v338, %v355
        %v357 = vmul.f32 %v342, %v355
        %v358 = vmul.f32 %v346, %v355
        %v359 = vmul.f32 %v350, %v355
        %v360 = vadd.f32 %v332, %v356
        %v361 = vadd.f32 %v333, %v357
        %v362 = vadd.f32 %v334, %v358
        %v363 = vadd.f32 %v335, %v359
        %v364 = vtanh.pop %v360
        %v365 = vtanh.pop %v361
        %v366 = vtanh.pop %v362
        %v367 = vtanh.pop %v363
        %v368 = vld [vmem:[%s3] sm:$0xff]
        %v369 = vld [vmem:[%s3 + $0x8] sm:$0xff]
        %v370 = vld [vmem:[%s3 + $0x10] sm:$0xff]
        %v371 = vld [vmem:[%s3 + $0x18] sm:$0xff]
        %v372 = vld [vmem:[%s4] sm:$0xff]
        %v373 = vld [vmem:[%s4 + $0x8] sm:$0xff]
        %v374 = vld [vmem:[%s4 + $0x10] sm:$0xff]
        %v375 = vld [vmem:[%s4 + $0x18] sm:$0xff]
        %377 = vset.pattern.permute.xlu0 0
        %378 = vperm.xlu0 %377, %v372
        %v379 = vpop.permute.xlu0 %378
        %382 = vset.pattern.permute.xlu0 0
        %383 = vperm.xlu0 %382, %v373
        %v384 = vpop.permute.xlu0 %383
        %387 = vset.pattern.permute.xlu0 0
        %388 = vperm.xlu0 %387, %v374
        %v389 = vpop.permute.xlu0 %388
        %392 = vset.pattern.permute.xlu0 0
        %393 = vperm.xlu0 %392, %v375
        %v394 = vpop.permute.xlu0 %393
        %vm396 = vcmask 261120
        %v398 = vsel %vm396, %v368, 0
        %v401 = vsel %vm396, %v369, 0
        %v404 = vsel %vm396, %v370, 0
        %v407 = vsel %vm396, %v371, 0
        %409 = vmatprep.subr.mxu0 0.0
        %410 = vmatpush1.msra.mxu0 0.0
        %411 = vmatprep.subr.mxu0 0.0
        %412 = vmatpush1.msra.mxu0 0.0
        %413 = vmatprep.subr.mxu0 0.0
        %414 = vmatpush1.msra.mxu0 0.0
        %415 = vmatprep.subr.mxu0 0.0
        %416 = vmatpush1.msra.mxu0 0.0
        %417 = vmatprep.subr.mxu0 0.0
        %418 = vmatpush1.msra.mxu0 0.0
        %419 = vmatprep.subr.mxu0 0.0
        %420 = vmatpush1.msra.mxu0 0.0
        %421 = vmatprep.subr.mxu0 0.0
        %422 = vmatpush1.msra.mxu0 0.0
        %423 = vmatprep.subr.mxu0 0.0
        %424 = vmatpush1.msra.mxu0 0.0
        %425 = vmatprep.subr.mxu0 0.0
        %426 = vmatpush1.msra.mxu0 0.0
        %427 = vmatprep.subr.mxu0 0.0
        %428 = vmatpush1.msra.mxu0 0.0
        %429 = vmatprep.subr.mxu0 0.0
        %430 = vmatpush1.msra.mxu0 0.0
        %431 = vmatprep.subr.mxu0 0.0
        %432 = vmatpush1.msra.mxu0 0.0
        %433 = vmatprep.subr.mxu0 0.0
        %434 = vmatpush1.msra.mxu0 %v367
        %435 = vmatprep.subr.mxu0 0.0
        %436 = vmatpush1.msra.mxu0 %v366
        %437 = vmatprep.subr.mxu0 0.0
        %438 = vmatpush1.msra.mxu0 %v365
        %439 = vmatprep.subr.mxu0 0.0
        %440 = vmatpush1.msra.mxu0 %v364
        %441 = vmatprep.subr.mxu0 0.0
        %442 = vmatpush2.msra.mxu0 0.0
        %443 = vmatprep.subr.mxu0 0.0
        %444 = vmatpush2.msra.mxu0 0.0
        %445 = vmatprep.subr.mxu0 0.0
        %446 = vmatpush2.msra.mxu0 0.0
        %447 = vmatprep.subr.mxu0 0.0
        %448 = vmatpush2.msra.mxu0 0.0
        %449 = vmatprep.subr.mxu0 0.0
        %450 = vmatpush2.msra.mxu0 0.0
        %451 = vmatprep.subr.mxu0 0.0
        %452 = vmatpush2.msra.mxu0 0.0
        %453 = vmatprep.subr.mxu0 0.0
        %454 = vmatpush2.msra.mxu0 0.0
        %455 = vmatprep.subr.mxu0 0.0
        %456 = vmatpush2.msra.mxu0 0.0
        %457 = vmatprep.subr.mxu0 0.0
        %458 = vmatpush2.msra.mxu0 0.0
        %459 = vmatprep.subr.mxu0 0.0
        %460 = vmatpush2.msra.mxu0 0.0
        %461 = vmatprep.subr.mxu0 0.0
        %462 = vmatpush2.msra.mxu0 0.0
        %463 = vmatprep.subr.mxu0 0.0
        %464 = vmatpush2.msra.mxu0 0.0
        %465 = vmatprep.subr.mxu0 0.0
        %466 = vmatpush2.msra.mxu0 0.0
        %467 = vmatprep.subr.mxu0 0.0
        %468 = vmatpush2.msra.mxu0 0.0
        %469 = vmatprep.subr.mxu0 0.0
        %470 = vmatpush2.msra.mxu0 0.0
        %471 = vmatprep.subr.mxu0 0.0
        %472 = vmatpush2.msra.mxu0 0.0
        %473 = vmatprep.mubr.f32.mxu0 0.0
        %474 = vmatmul.mubr.f32.gmra.mxu0 %v398
        %v475 = vpop.f32.mrf.mxu0
        %v476 = vadd.f32 %v379, %v475
        %v477 = vpop.f32.mrf.mxu0
        %478 = vmatprep.mubr.f32.mxu0 0.0
        %479 = vmatmul.mubr.f32.gmra.mxu0 %v401
        %v480 = vpop.f32.mrf.mxu0
        %v481 = vadd.f32 %v384, %v480
        %v482 = vpop.f32.mrf.mxu0
        %483 = vmatprep.mubr.f32.mxu0 0.0
        %484 = vmatmul.mubr.f32.gmra.mxu0 %v404
        %v485 = vpop.f32.mrf.mxu0
        %v486 = vadd.f32 %v389, %v485
        %v487 = vpop.f32.mrf.mxu0
        %488 = vmatprep.mubr.f32.mxu0 0.0
        %489 = vmatmul.mubr.f32.gmra.mxu0 %v407
        %v490 = vpop.f32.mrf.mxu0
        %v491 = vadd.f32 %v394, %v490
        %v492 = vpop.f32.mrf.mxu0
        %493 = vdwg.mxu0
        %v494 = vtanh.pop %v476
        %v495 = vtanh.pop %v481
        %v496 = vtanh.pop %v486
        %v497 = vtanh.pop %v491
        %v498 = vld [vmem:[%s5] sm:$0xff]
        %v499 = vld [vmem:[%s5 + $0x8] sm:$0xff]
        %v500 = vld [vmem:[%s5 + $0x10] sm:$0xff]
        %v501 = vld [vmem:[%s5 + $0x18] sm:$0xff]
        %v502 = vld [vmem:[#allocation2] sm:$0x1]
        %504 = vset.pattern.permute.xlu0 0
        %505 = vperm.xlu0 %504, %v498
        %v506 = vpop.permute.xlu0 %505
        %509 = vset.pattern.permute.xlu0 0
        %510 = vperm.xlu0 %509, %v499
        %v511 = vpop.permute.xlu0 %510
        %514 = vset.pattern.permute.xlu0 0
        %515 = vperm.xlu0 %514, %v500
        %v516 = vpop.permute.xlu0 %515
        %519 = vset.pattern.permute.xlu0 0
        %520 = vperm.xlu0 %519, %v501
        %v521 = vpop.permute.xlu0 %520
        %v523 = vmul.f32 %v506, %v494
        %v524 = vmul.f32 %v511, %v495
        %v525 = vmul.f32 %v516, %v496
        %v526 = vmul.f32 %v521, %v497
        %v527 = vadd.f32 %v523, %v524
        %v528 = vadd.f32 %v527, %v525
        %v529 = vadd.f32 %v528, %v526
        %v530 = vrot.slane %v529, 4
        %v531 = vadd.f32 %v529, %v530
        %v532 = vrot.slane %v531, 2
        %v533 = vadd.f32 %v531, %v532
        %v534 = vrot.slane %v533, 1
        %v535 = vadd.f32 %v533, %v534
        %537 = vset.pattern.permute.xlu0 0
        %538 = vperm.xlu0 %537, %v502
        %v539 = vpop.permute.xlu0 %538
        %v541 = vlaneseq
        %v542 = vshrl.u32 %v541, 7
        %v543 = vsub.s32 0, %v542
        %v544 = vrot.slane %v539, %v543
        %v545 = vadd.f32 %v535, %v544
        %546 = vst [vmem:[%s270] sm:$0x1] %v545
        %s547 = sand.u32 %s183, 1
        %s548 = scalar_lea.sflag [#allocation4], %s547
        %s549 = sand.u32 %s183, 1
        %s550 = scalar_lea.vmem [#allocation3], %s549
        // Predicated region
        $region49: #{burgers_pinn_forward.1} parent=47 // pred_check
          %p551 = pneg %p193
        $region50: #{burgers_pinn_forward.1} parent=47 // pred_check_branch
          %553 = sbr.rel (%p551) target = $region52
        $region51: #{burgers_pinn_forward.1} parent=47 // pred_region
          %s555 = ssub.s32 16, 16
          %556 = vsyncadd %s548, %s555
          %s557 = smul.addr %s23, 16
          %s558 = scalar_lea.hbm %s7, %s557
          %s560 = sshll.u32 %s550, 4
          %s561 = int_to_ptr.vmem [resolvable:$true] %s560
          %563 = dma.vmem_to_hbm [thread:$0]  %s561, 16, %s558, %s548
        $region52: #{burgers_pinn_forward.1} parent=47 // pred_fallthru
          _
      $region48: #{burgers_pinn_forward.1} parent=5 // pred_fallthru
        _
      %p564 = scmp.le.s32.totalorder 2, %s18
      // Predicated region
      $region53: #{burgers_pinn_forward.1} parent=5 // pred_check
        %p565 = pneg %p564
      $region54: #{burgers_pinn_forward.1} parent=5 // pred_check_branch
        %567 = sbr.rel (%p565) target = $region56
      $region55: #{burgers_pinn_forward.1} parent=5 // pred_region
        %s568 = ssub.s32 %s18, 2
        // Predicated region
        $region57: #{burgers_pinn_forward.1} parent=55 // pred_check
          %p569 = pneg %p199
        $region58: #{burgers_pinn_forward.1} parent=55 // pred_check_branch
          %571 = sbr.rel (%p569) target = $region60
        $region59: #{burgers_pinn_forward.1} parent=55 // pred_region
          %s572 = sand.u32 %s184, 1
          %s573 = scalar_lea.sflag [#allocation4], %s572
          %s574 = sand.u32 %s184, 1
          %s575 = scalar_lea.vmem [#allocation3], %s574
          %576 = dma.done %s573, 16
        $region60: #{burgers_pinn_forward.1} parent=55 // pred_fallthru
          _
      $region56: #{burgers_pinn_forward.1} parent=5 // pred_fallthru
        _
    $region6: #{burgers_pinn_forward.1} parent=1 // loop_footer
      %s22 = sadd.s32 1, %s18
    $region7: #{burgers_pinn_forward.1} parent=1 // loop_footer_branch
      %17 = sbr.rel target = $region3
    $region8: #{burgers_pinn_forward.1} parent=1 // loop_exit
      _
    %577 = vsyncpa [#allocation4], 1
    %s578 = scalar_lea.sflag [#allocation4], 1
    %579 = vsyncpa %s578, 1

</llo_original>
